<compile_context>
chip_gen: v6e
topology: v6e:2x2x1
jax: 0.10.0
libtpu: 0.0.40
codegen_flags: <defaults>
</compile_context>

<pallas_src>
import numpy as np
import jax
import jax.numpy as jnp
from jax.experimental import pallas as pl
from jax.experimental.pallas import tpu as pltpu


def _round_up(a: int, b: int) -> int:
    return ((a + b - 1) // b) * b


def _sma_coeff_matrix(q: int, output_length: int) -> np.ndarray:
    """(P, q) matrix M such that predictions = M @ (last q observations).

    Exploits linearity of the recurrence: the sliding window starts as the
    identity basis over the last q observations; each new prediction's
    coefficient vector is the mean of the current window's vectors and is
    pushed back into the window (matching the PyTorch loop exactly,
    including feeding predictions back in).
    """
    window = [np.eye(q, dtype=np.float64)[j] for j in range(q)]
    rows = []
    for _ in range(output_length):
        new = np.mean(np.stack(window, axis=0), axis=0)
        rows.append(new)
        window = window[1:] + [new]
    return np.stack(rows, axis=0).astype(np.float32)  # (P, q)


def _sma_kernel(m_ref, x_ref, o_ref):
    """o[b] = M @ x[b] for every batch row of the block.

    m_ref : (P, q)        f32 coefficient matrix (resident)
    x_ref : (Bt, q, Dt)   history tail block, native [batch, time, feature]
    o_ref : (Bt, P, Dt)   prediction block, native [batch, horizon, feature]
    """
    m = m_ref[...]
    for b in range(x_ref.shape[0]):            # static unroll, Bt <= 32
        xb = x_ref[b].astype(jnp.float32)      # (q, Dt)
        o_ref[b] = jnp.dot(
            m, xb, preferred_element_type=jnp.float32
        ).astype(o_ref.dtype)


def simple_moving_average(history_data: jax.Array, q: int, output_length: int) -> jax.Array:
    """history_data: [B, L, N, C] -> prediction [B, output_length, N, C]."""
    B, L, N, C = history_data.shape
    assert L >= q >= 1, "Error: window size > input data length"
    P = output_length
    D = N * C

    # Native layout; only the q-step tail is needed (one bounded slice, no
    # transposes): [B, q, D] with time on sublanes and features on lanes.
    x_tail = history_data.reshape(B, L, D)[:, L - q:, :]

    # Feature (lane) tiling: full-D blocks when D is modest (a block dim equal
    # to the full array dim needs no 128-alignment and no padding copy);
    # tile + pad only for very large feature dims.
    MAX_LANE_TILE = 4096
    if D <= MAX_LANE_TILE:
        d_tile, d_pad = D, D
    else:
        d_tile = MAX_LANE_TILE
        d_pad = _round_up(D, d_tile)
        x_tail = jnp.pad(x_tail, ((0, 0), (0, 0), (0, d_pad - D)))

    # Batch blocking: target ~1 MiB of HBM traffic per grid step to amortize
    # per-step overhead; cap to keep the in-kernel unroll and VMEM use modest.
    itemsize = jnp.dtype(history_data.dtype).itemsize
    bytes_per_batch = (q + P) * d_tile * itemsize
    batch_tile = int(max(1, min(B, 32, (1 << 20) // max(1, bytes_per_batch))))

    nb = pl.cdiv(B, batch_tile)
    nd = d_pad // d_tile

    coeff = jnp.asarray(_sma_coeff_matrix(q, P))  # (P, q) f32

    out = pl.pallas_call(
        _sma_kernel,
        out_shape=jax.ShapeDtypeStruct((B, P, d_pad), history_data.dtype),
        grid_spec=pltpu.PrefetchScalarGridSpec(
            num_scalar_prefetch=0,
            grid=(nb, nd),
            in_specs=[
                pl.BlockSpec((P, q), lambda i, j: (0, 0)),                      # coeffs (resident)
                pl.BlockSpec((batch_tile, q, d_tile), lambda i, j: (i, 0, j)),  # history tail
            ],
            out_specs=pl.BlockSpec((batch_tile, P, d_tile), lambda i, j: (i, 0, j)),
        ),
        compiler_params=pltpu.CompilerParams(
            dimension_semantics=("parallel", "parallel")),
    )(coeff, x_tail)

    # Strip lane padding (no-op when nd == 1) and restore [B, P, N, C] — free.
    pred = out[:, :, :D].reshape(B, P, N, C)
    return pred


def _reference(history_data, q, output_length):
    data_full = history_data
    for _ in range(output_length):
        window = data_full[:, -q:, :, :]
        avg = jnp.mean(window, axis=1, keepdims=True)
        data_full = jnp.concatenate([data_full, avg], axis=1)
    return data_full[:, -output_length:, :, :]


if __name__ == "__main__":
    # module config
    q = 4
    input_length = 8
    output_length = 6

    # small deterministic input: [B, L, N, C]
    B, N, C = 2, 4, 2
    key = jax.random.PRNGKey(0)
    history_data = jax.random.normal(key, (B, input_length, N, C), dtype=jnp.float32)

    pred = simple_moving_average(history_data, q=q, output_length=output_length)
    pred = jax.block_until_ready(pred)

    ref = _reference(history_data, q, output_length)
    assert pred.shape == (B, output_length, N, C)
    assert jnp.allclose(pred, ref, atol=1e-5, rtol=1e-5), "mismatch vs reference"

    print("KERNEL_OK")
</pallas_src>

<mosaic_0001>
module attributes {stable_mosaic.version = 11 : i64} {
  func.func @_sma_kernel(%arg0: i32, %arg1: i32, %arg2: memref<6x4xf32, #tpu.memory_space<vmem>>, %arg3: memref<2x4x8xf32, #tpu.memory_space<vmem>>, %arg4: memref<2x6x8xf32, #tpu.memory_space<vmem>>) attributes {dimension_semantics = [#tpu.dimension_semantics<parallel>, #tpu.dimension_semantics<parallel>], iteration_bounds = array<i64: 1, 1>, scalar_prefetch = 0 : i64, scratch_operands = 0 : i64, tpu.core_type = #tpu.core_type<tc>, window_params = [{pipeline_mode = #tpu.pipeline_mode<synchronous>, transform_indices = @transform_0, window_bounds = array<i64: 6, 4>}, {transform_indices = @transform_1, window_bounds = array<i64: 2, 4, 8>}, {transform_indices = @transform_2, window_bounds = array<i64: 2, 6, 8>}]} {
    %c0 = arith.constant 0 : index
    %c0_0 = arith.constant 0 : index
    %0 = vector.load %arg2[%c0, %c0_0] : memref<6x4xf32, #tpu.memory_space<vmem>>, vector<6x4xf32>
    %c0_1 = arith.constant 0 : index
    %c0_2 = arith.constant 0 : index
    %c0_3 = arith.constant 0 : index
    %1 = vector.load %arg3[%c0_1, %c0_2, %c0_3] : memref<2x4x8xf32, #tpu.memory_space<vmem>>, vector<1x4x8xf32>
    %2 = vector.shape_cast %1 : vector<1x4x8xf32> to vector<4x8xf32>
    %cst = arith.constant dense<0.000000e+00> : vector<6x8xf32>
    %3 = tpu.matmul %0, %2, %cst {dimension_numbers = #tpu.dot_dimension_numbers<[1], [0], [0], [1], [0, 0, 1, 1], [], []>} : vector<6x4xf32>, vector<4x8xf32>, vector<6x8xf32> -> vector<6x8xf32>
    %c0_4 = arith.constant 0 : index
    %c0_5 = arith.constant 0 : index
    %c0_6 = arith.constant 0 : index
    %4 = vector.load %arg4[%c0_4, %c0_5, %c0_6] : memref<2x6x8xf32, #tpu.memory_space<vmem>>, vector<1x6x8xf32>
    %5 = vector.shape_cast %4 : vector<1x6x8xf32> to vector<6x8xf32>
    %6 = vector.shape_cast %3 : vector<6x8xf32> to vector<1x6x8xf32>
    tpu.vector_store %arg4[%c0_4, %c0_5, %c0_6], %6 {strides = array<i32>} : memref<2x6x8xf32, #tpu.memory_space<vmem>>, vector<1x6x8xf32>,
    %c1 = arith.constant 1 : index
    %c0_7 = arith.constant 0 : index
    %c0_8 = arith.constant 0 : index
    %7 = vector.load %arg3[%c1, %c0_7, %c0_8] : memref<2x4x8xf32, #tpu.memory_space<vmem>>, vector<1x4x8xf32>
    %8 = vector.shape_cast %7 : vector<1x4x8xf32> to vector<4x8xf32>
    %cst_9 = arith.constant dense<0.000000e+00> : vector<6x8xf32>
    %9 = tpu.matmul %0, %8, %cst_9 {dimension_numbers = #tpu.dot_dimension_numbers<[1], [0], [0], [1], [0, 0, 1, 1], [], []>} : vector<6x4xf32>, vector<4x8xf32>, vector<6x8xf32> -> vector<6x8xf32>
    %c1_10 = arith.constant 1 : index
    %c0_11 = arith.constant 0 : index
    %c0_12 = arith.constant 0 : index
    %10 = vector.load %arg4[%c1_10, %c0_11, %c0_12] : memref<2x6x8xf32, #tpu.memory_space<vmem>>, vector<1x6x8xf32>
    %11 = vector.shape_cast %10 : vector<1x6x8xf32> to vector<6x8xf32>
    %12 = vector.shape_cast %9 : vector<6x8xf32> to vector<1x6x8xf32>
    tpu.vector_store %arg4[%c1_10, %c0_11, %c0_12], %12 {strides = array<i32>} : memref<2x6x8xf32, #tpu.memory_space<vmem>>, vector<1x6x8xf32>,
    return
  }
  func.func @transform_0(%arg0: i32, %arg1: i32) -> (i32, i32) {
    %c0_i32 = arith.constant 0 : i32
    %c0_i32_0 = arith.constant 0 : i32
    %c0_i32_1 = arith.constant 0 : i32
    return %c0_i32, %c0_i32_0 : i32, i32
  }
  func.func @transform_1(%arg0: i32, %arg1: i32) -> (i32, i32, i32) {
    %c0_i32 = arith.constant 0 : i32
    %c0_i32_0 = arith.constant 0 : i32
    return %arg0, %c0_i32, %arg1 : i32, i32, i32
  }
  func.func @transform_2(%arg0: i32, %arg1: i32) -> (i32, i32, i32) {
    %c0_i32 = arith.constant 0 : i32
    %c0_i32_0 = arith.constant 0 : i32
    return %arg0, %c0_i32, %arg1 : i32, i32, i32
  }
}

</mosaic_0001>

<llo_original>
// kernel: tpu_custom_call.1
$region0: #{tpu_custom_call.1}
  #allocation0 [shape = 'u32[]', space=smem, size = 0x4, offset = 0x4, fixed_abs, tag = 'smem constant byte address 0x4 - core index']
  #allocation1 [shape = 'u32[144,128]{1,0:T(1,128)}', space=vmem, size = 0x12000, scoped, tag = 'internal scratch']
  %s0 = inlined_call_operand.vmem [shape: f32[6,4], index: 0, kind: input, shape index: {}]
  %s1 = inlined_call_operand.vmem [shape: f32[2,4,8], index: 1, kind: input, shape index: {}]
  %s2 = inlined_call_operand.vmem [shape: f32[2,6,8], index: 2, kind: output, shape index: {}]
  %s3 = sld [smem:[#allocation0]]
  $region18: #{tpu_custom_call.1} parent=0
    _
  %s5 = ssub.s32 1, %s3
  %s6 = scalar_select 0, %s5, %s3
  // Predicated region
  $region2: #{tpu_custom_call.1} parent=0 // pred_check
    _
  $region3: #{tpu_custom_call.1} parent=0 // pred_check_branch
    %8 = sbr.rel (0) target = $region5
  $region4: #{tpu_custom_call.1} parent=0 // pred_region
    _
  $region5: #{tpu_custom_call.1} parent=0 // pred_fallthru
    _
  // Predicated region
  $region6: #{tpu_custom_call.1} parent=0 // pred_check
    _
  $region7: #{tpu_custom_call.1} parent=0 // pred_check_branch
    %10 = sbr.rel (0) target = $region9
  $region8: #{tpu_custom_call.1} parent=0 // pred_region
    _
  $region9: #{tpu_custom_call.1} parent=0 // pred_fallthru
    _
  %v11 = vld [vmem:[%s0] sm:$0x3f]
  %v12 = vld [vmem:[%s1] sm:$0xf]
  %vm13 = vcmask 31744
  %v15 = vsel %vm13, %v11, 0
  %vm17 = vcmask 1043456
  %v19 = vsel %vm17, %v12, 0
  %21 = vmatprep.subr.mxu0 0.0
  %22 = vmatpush1.msra.mxu0 0.0
  %23 = vmatprep.subr.mxu0 0.0
  %24 = vmatpush1.msra.mxu0 0.0
  %25 = vmatprep.subr.mxu0 0.0
  %26 = vmatpush1.msra.mxu0 0.0
  %27 = vmatprep.subr.mxu0 0.0
  %28 = vmatpush1.msra.mxu0 0.0
  %29 = vmatprep.subr.mxu0 0.0
  %30 = vmatpush1.msra.mxu0 0.0
  %31 = vmatprep.subr.mxu0 0.0
  %32 = vmatpush1.msra.mxu0 0.0
  %33 = vmatprep.subr.mxu0 0.0
  %34 = vmatpush1.msra.mxu0 0.0
  %35 = vmatprep.subr.mxu0 0.0
  %36 = vmatpush1.msra.mxu0 0.0
  %37 = vmatprep.subr.mxu0 0.0
  %38 = vmatpush1.msra.mxu0 0.0
  %39 = vmatprep.subr.mxu0 0.0
  %40 = vmatpush1.msra.mxu0 0.0
  %41 = vmatprep.subr.mxu0 0.0
  %42 = vmatpush1.msra.mxu0 0.0
  %43 = vmatprep.subr.mxu0 0.0
  %44 = vmatpush1.msra.mxu0 0.0
  %45 = vmatprep.subr.mxu0 0.0
  %46 = vmatpush1.msra.mxu0 0.0
  %47 = vmatprep.subr.mxu0 0.0
  %48 = vmatpush1.msra.mxu0 0.0
  %49 = vmatprep.subr.mxu0 0.0
  %50 = vmatpush1.msra.mxu0 0.0
  %51 = vmatprep.subr.mxu0 0.0
  %52 = vmatpush1.msra.mxu0 %v19
  %53 = vmatprep.subr.mxu0 0.0
  %54 = vmatpush2.msra.mxu0 0.0
  %55 = vmatprep.subr.mxu0 0.0
  %56 = vmatpush2.msra.mxu0 0.0
  %57 = vmatprep.subr.mxu0 0.0
  %58 = vmatpush2.msra.mxu0 0.0
  %59 = vmatprep.subr.mxu0 0.0
  %60 = vmatpush2.msra.mxu0 0.0
  %61 = vmatprep.subr.mxu0 0.0
  %62 = vmatpush2.msra.mxu0 0.0
  %63 = vmatprep.subr.mxu0 0.0
  %64 = vmatpush2.msra.mxu0 0.0
  %65 = vmatprep.subr.mxu0 0.0
  %66 = vmatpush2.msra.mxu0 0.0
  %67 = vmatprep.subr.mxu0 0.0
  %68 = vmatpush2.msra.mxu0 0.0
  %69 = vmatprep.subr.mxu0 0.0
  %70 = vmatpush2.msra.mxu0 0.0
  %71 = vmatprep.subr.mxu0 0.0
  %72 = vmatpush2.msra.mxu0 0.0
  %73 = vmatprep.subr.mxu0 0.0
  %74 = vmatpush2.msra.mxu0 0.0
  %75 = vmatprep.subr.mxu0 0.0
  %76 = vmatpush2.msra.mxu0 0.0
  %77 = vmatprep.subr.mxu0 0.0
  %78 = vmatpush2.msra.mxu0 0.0
  %79 = vmatprep.subr.mxu0 0.0
  %80 = vmatpush2.msra.mxu0 0.0
  %81 = vmatprep.subr.mxu0 0.0
  %82 = vmatpush2.msra.mxu0 0.0
  %83 = vmatprep.subr.mxu0 0.0
  %84 = vmatpush2.msra.mxu0 0.0
  %85 = vmatprep.mubr.f32.mxu0 0.0
  %86 = vmatmul.mubr.f32.gmra.mxu0 %v15
  %v87 = vpop.f32.mrf.mxu0
  %v88 = vadd.f32 0.0, %v87
  %v89 = vpop.f32.mrf.mxu0
  %90 = vdwg.mxu0
  %vm91 = vcmask 62464
  %92 = vst.msk [vmem:[%s2] sm:$0x3f] %vm91, %v88
  %s93 = scalar_lea.vmem %s1, 4
  %v94 = vld [vmem:[%s93] sm:$0xf]
  %v96 = vsel %vm17, %v94, 0
  %98 = vmatprep.subr.mxu0 0.0
  %99 = vmatpush1.msra.mxu0 0.0
  %100 = vmatprep.subr.mxu0 0.0
  %101 = vmatpush1.msra.mxu0 0.0
  %102 = vmatprep.subr.mxu0 0.0
  %103 = vmatpush1.msra.mxu0 0.0
  %104 = vmatprep.subr.mxu0 0.0
  %105 = vmatpush1.msra.mxu0 0.0
  %106 = vmatprep.subr.mxu0 0.0
  %107 = vmatpush1.msra.mxu0 0.0
  %108 = vmatprep.subr.mxu0 0.0
  %109 = vmatpush1.msra.mxu0 0.0
  %110 = vmatprep.subr.mxu0 0.0
  %111 = vmatpush1.msra.mxu0 0.0
  %112 = vmatprep.subr.mxu0 0.0
  %113 = vmatpush1.msra.mxu0 0.0
  %114 = vmatprep.subr.mxu0 0.0
  %115 = vmatpush1.msra.mxu0 0.0
  %116 = vmatprep.subr.mxu0 0.0
  %117 = vmatpush1.msra.mxu0 0.0
  %118 = vmatprep.subr.mxu0 0.0
  %119 = vmatpush1.msra.mxu0 0.0
  %120 = vmatprep.subr.mxu0 0.0
  %121 = vmatpush1.msra.mxu0 0.0
  %122 = vmatprep.subr.mxu0 0.0
  %123 = vmatpush1.msra.mxu0 0.0
  %124 = vmatprep.subr.mxu0 0.0
  %125 = vmatpush1.msra.mxu0 0.0
  %126 = vmatprep.subr.mxu0 0.0
  %127 = vmatpush1.msra.mxu0 0.0
  %128 = vmatprep.subr.mxu0 0.0
  %129 = vmatpush1.msra.mxu0 %v96
  %130 = vmatprep.subr.mxu0 0.0
  %131 = vmatpush2.msra.mxu0 0.0
  %132 = vmatprep.subr.mxu0 0.0
  %133 = vmatpush2.msra.mxu0 0.0
  %134 = vmatprep.subr.mxu0 0.0
  %135 = vmatpush2.msra.mxu0 0.0
  %136 = vmatprep.subr.mxu0 0.0
  %137 = vmatpush2.msra.mxu0 0.0
  %138 = vmatprep.subr.mxu0 0.0
  %139 = vmatpush2.msra.mxu0 0.0
  %140 = vmatprep.subr.mxu0 0.0
  %141 = vmatpush2.msra.mxu0 0.0
  %142 = vmatprep.subr.mxu0 0.0
  %143 = vmatpush2.msra.mxu0 0.0
  %144 = vmatprep.subr.mxu0 0.0
  %145 = vmatpush2.msra.mxu0 0.0
  %146 = vmatprep.subr.mxu0 0.0
  %147 = vmatpush2.msra.mxu0 0.0
  %148 = vmatprep.subr.mxu0 0.0
  %149 = vmatpush2.msra.mxu0 0.0
  %150 = vmatprep.subr.mxu0 0.0
  %151 = vmatpush2.msra.mxu0 0.0
  %152 = vmatprep.subr.mxu0 0.0
  %153 = vmatpush2.msra.mxu0 0.0
  %154 = vmatprep.subr.mxu0 0.0
  %155 = vmatpush2.msra.mxu0 0.0
  %156 = vmatprep.subr.mxu0 0.0
  %157 = vmatpush2.msra.mxu0 0.0
  %158 = vmatprep.subr.mxu0 0.0
  %159 = vmatpush2.msra.mxu0 0.0
  %160 = vmatprep.subr.mxu0 0.0
  %161 = vmatpush2.msra.mxu0 0.0
  %162 = vmatprep.mubr.f32.mxu0 0.0
  %163 = vmatmul.mubr.f32.gmra.mxu0 %v15
  %v164 = vpop.f32.mrf.mxu0
  %v165 = vadd.f32 0.0, %v164
  %v166 = vpop.f32.mrf.mxu0
  %167 = vdwg.mxu0
  %s168 = scalar_lea.vmem %s2, 8
  %169 = vst.msk [vmem:[%s168] sm:$0x3f] %vm91, %v165
  // Predicated region
  $region10: #{tpu_custom_call.1} parent=0 // pred_check
    _
  $region11: #{tpu_custom_call.1} parent=0 // pred_check_branch
    %171 = sbr.rel (0) target = $region13
  $region12: #{tpu_custom_call.1} parent=0 // pred_region
    _
  $region13: #{tpu_custom_call.1} parent=0 // pred_fallthru
    _
  // Predicated region
  $region14: #{tpu_custom_call.1} parent=0 // pred_check
    _
  $region15: #{tpu_custom_call.1} parent=0 // pred_check_branch
    %173 = sbr.rel (0) target = $region17
  $region16: #{tpu_custom_call.1} parent=0 // pred_region
    _
  $region17: #{tpu_custom_call.1} parent=0 // pred_fallthru
    _

</llo_original>
